<compile_context>
chip_gen: v5e
topology: v5e:2x2
jax: 0.10.0
libtpu: 0.0.40
codegen_flags: <defaults>
</compile_context>

<pallas_src>
import functools

import jax
import jax.numpy as jnp
from jax import lax
from jax.experimental import pallas as pl
from jax.experimental.pallas import tpu as pltpu

LANE = 128  # TPU lane width; feature dims are padded up to a multiple of this.


def neuralnet2_kernel(x_ref, w1_ref, b1_ref, o_ref):
    """One (TILE_B, Dp) batch tile of  out = linear1(relu(linear1(x))).

    x_ref : (TILE_B, Dp) bf16
    w1_ref: (Dp, Dp)     bf16, PyTorch layout (hidden, input); contracted on last axis
    b1_ref: (1, Dp)      f32
    o_ref : (TILE_B, Dp) f32
    """
    # x @ W1^T without materializing a transpose: contract last dims of both operands.
    dn = (((1,), (1,)), ((), ()))
    h = lax.dot_general(x_ref[...], w1_ref[...], dn,
                        preferred_element_type=jnp.float32)
    h = jnp.maximum(h + b1_ref[...], 0.0)                       # bias + ReLU in f32
    out = lax.dot_general(h.astype(jnp.bfloat16), w1_ref[...], dn,
                          preferred_element_type=jnp.float32)
    o_ref[...] = (out + b1_ref[...]).astype(o_ref.dtype)


def _round_up(n, m):
    return ((n + m - 1) // m) * m


def _pick_tile_b(padded_batch):
    for cand in (512, 256, 128):
        if padded_batch % cand == 0:
            return cand
    return padded_batch


@functools.partial(jax.jit, static_argnames=("tile_b",))
def neuralnet2_forward(x, w1, b1, *, tile_b=None):
    """x: (B, input) f32; w1: (hidden, input) f32 (PyTorch layout); b1: (hidden,) f32."""
    B, in_features = x.shape
    hidden, in_f2 = w1.shape
    assert in_f2 == in_features
    assert hidden == in_features, "forward re-applies linear1; requires hidden == input"

    # Lane-dense feature padding (zeros: padded columns stay 0 through bias/ReLU/matmul)
    Dp = _round_up(in_features, LANE)
    Bp = _round_up(B, LANE)
    if tile_b is None:
        tile_b = _pick_tile_b(Bp)
    Bp = _round_up(Bp, tile_b)

    xb = x.astype(jnp.bfloat16)
    wb = w1.astype(jnp.bfloat16)
    bf = b1.astype(jnp.float32).reshape(1, hidden)
    if (Bp, Dp) != (B, in_features):
        xb = jnp.pad(xb, ((0, Bp - B), (0, Dp - in_features)))
    if Dp != in_features:
        wb = jnp.pad(wb, ((0, Dp - hidden), (0, Dp - in_features)))
        bf = jnp.pad(bf, ((0, 0), (0, Dp - hidden)))

    grid = (Bp // tile_b,)
    flops = 2 * (2 * Bp * Dp * Dp)  # two (Bp,Dp)x(Dp,Dp) matmuls
    bytes_accessed = xb.size * 2 + wb.size * 2 + bf.size * 4 + Bp * Dp * 4

    out = pl.pallas_call(
        neuralnet2_kernel,
        out_shape=jax.ShapeDtypeStruct((Bp, Dp), jnp.float32),
        grid=grid,
        in_specs=[
            pl.BlockSpec((tile_b, Dp), lambda i: (i, 0),
                         memory_space=pltpu.MemorySpace.VMEM),
            pl.BlockSpec((Dp, Dp), lambda i: (0, 0),          # weight: VMEM-resident
                         memory_space=pltpu.MemorySpace.VMEM),
            pl.BlockSpec((1, Dp), lambda i: (0, 0),           # bias: VMEM-resident
                         memory_space=pltpu.MemorySpace.VMEM),
        ],
        out_specs=pl.BlockSpec((tile_b, Dp), lambda i: (i, 0),
                               memory_space=pltpu.MemorySpace.VMEM),
        compiler_params=pltpu.CompilerParams(
            dimension_semantics=("parallel",),        # batch tiles are independent
            vmem_limit_bytes=32 * 1024 * 1024,        # safe on v5e/v6e (128M) and v7x (64M)
        ),
        cost_estimate=pl.CostEstimate(flops=flops, transcendentals=0,
                                      bytes_accessed=bytes_accessed),
    )(xb, wb, bf)

    return out[:B, :hidden]


def reference_forward(x, w1, b1):
    h = jnp.maximum(x @ w1.T + b1, 0.0)
    return h @ w1.T + b1


def _make_params(key, input_size, hidden_size, num_classes):
    kx, kw1, kb1, kw2, kb2 = jax.random.split(key, 5)
    # PyTorch-Linear-style uniform init with bound 1/sqrt(fan_in).
    bound1 = 1.0 / jnp.sqrt(jnp.float32(input_size))
    w1 = jax.random.uniform(kw1, (hidden_size, input_size), jnp.float32, -bound1, bound1)
    b1 = jax.random.uniform(kb1, (hidden_size,), jnp.float32, -bound1, bound1)
    # linear2 parameters exist in the module but are never used in forward.
    bound2 = 1.0 / jnp.sqrt(jnp.float32(hidden_size))
    w2 = jax.random.uniform(kw2, (num_classes, hidden_size), jnp.float32, -bound2, bound2)
    b2 = jax.random.uniform(kb2, (num_classes,), jnp.float32, -bound2, bound2)
    return kx, w1, b1, w2, b2


if __name__ == "__main__":
    key = jax.random.PRNGKey(0)
    k_a, k_b = jax.random.split(key)

    # Case 1: lane-aligned, MXU-friendly small shapes (hidden == input required).
    batch, input_size, hidden_size, num_classes = 256, 128, 128, 10
    kx, w1, b1, _, _ = _make_params(k_a, input_size, hidden_size, num_classes)
    x = jax.random.normal(kx, (batch, input_size), jnp.float32)
    out = neuralnet2_forward(x, w1, b1)
    jax.block_until_ready(out)
    ref = reference_forward(x, w1, b1)
    assert out.shape == (batch, hidden_size)
    # bf16 MXU inputs with f32 accumulation -> loosened tolerance vs pure-f32 reference.
    assert jnp.allclose(out, ref, atol=3e-2, rtol=3e-2), float(jnp.max(jnp.abs(out - ref)))

    # Case 2: un-aligned small shapes exercise the zero-padding path.
    batch2, feat2 = 37, 96
    kx2, w1b, b1b, _, _ = _make_params(k_b, feat2, feat2, num_classes)
    x2 = jax.random.normal(kx2, (batch2, feat2), jnp.float32)
    out2 = neuralnet2_forward(x2, w1b, b1b)
    jax.block_until_ready(out2)
    ref2 = reference_forward(x2, w1b, b1b)
    assert out2.shape == (batch2, feat2)
    assert jnp.allclose(out2, ref2, atol=3e-2, rtol=3e-2), float(jnp.max(jnp.abs(out2 - ref2)))

    print("KERNEL_OK")
</pallas_src>

<mosaic_0001>
module attributes {stable_mosaic.version = 11 : i64} {
  func.func @neuralnet2_kernel(%arg0: i32, %arg1: memref<256x128xbf16, #tpu.memory_space<vmem>>, %arg2: memref<128x128xbf16, #tpu.memory_space<vmem>>, %arg3: memref<1x128xf32, #tpu.memory_space<vmem>>, %arg4: memref<256x128xf32, #tpu.memory_space<vmem>>) attributes {dimension_semantics = [#tpu.dimension_semantics<parallel>], iteration_bounds = array<i64: 1>, scalar_prefetch = 0 : i64, scratch_operands = 0 : i64, tpu.core_type = #tpu.core_type<tc>, window_params = [{transform_indices = @transform_0, window_bounds = array<i64: 256, 128>}, {pipeline_mode = #tpu.pipeline_mode<synchronous>, transform_indices = @transform_1, window_bounds = array<i64: 128, 128>}, {pipeline_mode = #tpu.pipeline_mode<synchronous>, transform_indices = @transform_2, window_bounds = array<i64: 1, 128>}, {transform_indices = @transform_3, window_bounds = array<i64: 256, 128>}]} {
    %c0 = arith.constant 0 : index
    %c0_0 = arith.constant 0 : index
    %0 = vector.load %arg1[%c0, %c0_0] : memref<256x128xbf16, #tpu.memory_space<vmem>>, vector<256x128xbf16>
    %c0_1 = arith.constant 0 : index
    %c0_2 = arith.constant 0 : index
    %1 = vector.load %arg2[%c0_1, %c0_2] : memref<128x128xbf16, #tpu.memory_space<vmem>>, vector<128x128xbf16>
    %cst = arith.constant dense<0.000000e+00> : vector<256x128xf32>
    %2 = tpu.matmul %0, %1, %cst {dimension_numbers = #tpu.dot_dimension_numbers<[1], [1], [0], [0], [0, 0, 1, 0], [], []>} : vector<256x128xbf16>, vector<128x128xbf16>, vector<256x128xf32> -> vector<256x128xf32>
    %c0_3 = arith.constant 0 : index
    %c0_4 = arith.constant 0 : index
    %3 = vector.load %arg3[%c0_3, %c0_4] : memref<1x128xf32, #tpu.memory_space<vmem>>, vector<1x128xf32>
    %4 = vector.broadcast %3 : vector<1x128xf32> to vector<256x128xf32>
    %5 = arith.addf %2, %4 : vector<256x128xf32>
    %cst_5 = arith.constant 0.000000e+00 : f32
    %6 = vector.broadcast %cst_5 : f32 to vector<256x128xf32>
    %7 = arith.maximumf %5, %6 : vector<256x128xf32>
    %8 = arith.truncf %7 : vector<256x128xf32> to vector<256x128xbf16>
    %c0_6 = arith.constant 0 : index
    %c0_7 = arith.constant 0 : index
    %9 = vector.load %arg2[%c0_6, %c0_7] : memref<128x128xbf16, #tpu.memory_space<vmem>>, vector<128x128xbf16>
    %cst_8 = arith.constant dense<0.000000e+00> : vector<256x128xf32>
    %10 = tpu.matmul %8, %9, %cst_8 {dimension_numbers = #tpu.dot_dimension_numbers<[1], [1], [0], [0], [0, 0, 1, 0], [], []>} : vector<256x128xbf16>, vector<128x128xbf16>, vector<256x128xf32> -> vector<256x128xf32>
    %c0_9 = arith.constant 0 : index
    %c0_10 = arith.constant 0 : index
    %11 = vector.load %arg3[%c0_9, %c0_10] : memref<1x128xf32, #tpu.memory_space<vmem>>, vector<1x128xf32>
    %12 = vector.broadcast %11 : vector<1x128xf32> to vector<256x128xf32>
    %13 = arith.addf %10, %12 : vector<256x128xf32>
    %c0_11 = arith.constant 0 : index
    %c0_12 = arith.constant 0 : index
    %14 = vector.load %arg4[%c0_11, %c0_12] : memref<256x128xf32, #tpu.memory_space<vmem>>, vector<256x128xf32>
    tpu.vector_store %arg4[%c0_11, %c0_12], %13 {strides = array<i32>} : memref<256x128xf32, #tpu.memory_space<vmem>>, vector<256x128xf32>,
    return
  }
  func.func @transform_0(%arg0: i32) -> (i32, i32) {
    %c0_i32 = arith.constant 0 : i32
    %c0_i32_0 = arith.constant 0 : i32
    return %arg0, %c0_i32 : i32, i32
  }
  func.func @transform_1(%arg0: i32) -> (i32, i32) {
    %c0_i32 = arith.constant 0 : i32
    %c0_i32_0 = arith.constant 0 : i32
    %c0_i32_1 = arith.constant 0 : i32
    return %c0_i32, %c0_i32_0 : i32, i32
  }
  func.func @transform_2(%arg0: i32) -> (i32, i32) {
    %c0_i32 = arith.constant 0 : i32
    %c0_i32_0 = arith.constant 0 : i32
    %c0_i32_1 = arith.constant 0 : i32
    return %c0_i32, %c0_i32_0 : i32, i32
  }
  func.func @transform_3(%arg0: i32) -> (i32, i32) {
    %c0_i32 = arith.constant 0 : i32
    %c0_i32_0 = arith.constant 0 : i32
    return %arg0, %c0_i32 : i32, i32
  }
}

</mosaic_0001>

<llo_original>
// kernel: neuralnet2_forward.1
$region0: #{neuralnet2_forward.1}
  #allocation0 [shape = 'u32[]', space=smem, size = 0x4, offset = 0x4, fixed_abs, tag = 'smem constant byte address 0x4 - core index']
  #allocation1 [shape = 'u32[72,128]{1,0:T(1,128)}', space=vmem, size = 0x9000, scoped, tag = 'internal scratch']
  %s0 = inlined_call_operand.vmem [shape: bf16[256,128], index: 0, kind: input, shape index: {}]
  %s1 = inlined_call_operand.vmem [shape: bf16[128,128], index: 1, kind: input, shape index: {}]
  %s2 = inlined_call_operand.vmem [shape: f32[1,128], index: 2, kind: input, shape index: {}]
  %s3 = inlined_call_operand.hbm [shape: f32[256,128], index: 3, kind: output, shape index: {}]
  %s4 = sld [smem:[#allocation0]]
  $region22: #{neuralnet2_forward.1} parent=0
    _
  %s6 = ssub.s32 1, %s4
  %s7 = scalar_select 0, %s6, %s4
  $region1: #{neuralnet2_forward.1} parent=0
    #allocation2 [shape = 'u8[131072]{0}', space=vmem, size = 0x20000, scoped, tag = 'output window, operand 0, single buffered']
    #allocation3 [shape = 's32[1]{0}', space=sflag, size = 0x4, scoped, tag = 'scoped memory for neuralnet2_forward.1']
    %8 = vsyncpa [#allocation3], 0
    // Predicated region
    $region2: #{neuralnet2_forward.1} parent=1 // pred_check
      _
    $region3: #{neuralnet2_forward.1} parent=1 // pred_check_branch
      %10 = sbr.rel (0) target = $region5
    $region4: #{neuralnet2_forward.1} parent=1 // pred_region
      _
    $region5: #{neuralnet2_forward.1} parent=1 // pred_fallthru
      _
    // Predicated region
    $region6: #{neuralnet2_forward.1} parent=1 // pred_check
      _
    $region7: #{neuralnet2_forward.1} parent=1 // pred_check_branch
      %12 = sbr.rel (0) target = $region9
    $region8: #{neuralnet2_forward.1} parent=1 // pred_region
      _
    $region9: #{neuralnet2_forward.1} parent=1 // pred_fallthru
      _
    // Predicated region
    $region10: #{neuralnet2_forward.1} parent=1 // pred_check
      _
    $region11: #{neuralnet2_forward.1} parent=1 // pred_check_branch
      %14 = sbr.rel (0) target = $region13
    $region12: #{neuralnet2_forward.1} parent=1 // pred_region
      _
    $region13: #{neuralnet2_forward.1} parent=1 // pred_fallthru
      _
    %v15 = vld [vmem:[%s0] sm:$0xf]
    %v16 = vld [vmem:[%s0 + $0x4] sm:$0xf]
    %v17 = vld [vmem:[%s0 + $0x8] sm:$0xf]
    %v18 = vld [vmem:[%s0 + $0xc] sm:$0xf]
    %v19 = vld [vmem:[%s0 + $0x10] sm:$0xf]
    %v20 = vld [vmem:[%s0 + $0x14] sm:$0xf]
    %v21 = vld [vmem:[%s0 + $0x18] sm:$0xf]
    %v22 = vld [vmem:[%s0 + $0x1c] sm:$0xf]
    %v23 = vld [vmem:[%s0 + $0x20] sm:$0xf]
    %v24 = vld [vmem:[%s0 + $0x24] sm:$0xf]
    %v25 = vld [vmem:[%s0 + $0x28] sm:$0xf]
    %v26 = vld [vmem:[%s0 + $0x2c] sm:$0xf]
    %v27 = vld [vmem:[%s0 + $0x30] sm:$0xf]
    %v28 = vld [vmem:[%s0 + $0x34] sm:$0xf]
    %v29 = vld [vmem:[%s0 + $0x38] sm:$0xf]
    %v30 = vld [vmem:[%s0 + $0x3c] sm:$0xf]
    %v31 = vld [vmem:[%s0 + $0x40] sm:$0xf]
    %v32 = vld [vmem:[%s0 + $0x44] sm:$0xf]
    %v33 = vld [vmem:[%s0 + $0x48] sm:$0xf]
    %v34 = vld [vmem:[%s0 + $0x4c] sm:$0xf]
    %v35 = vld [vmem:[%s0 + $0x50] sm:$0xf]
    %v36 = vld [vmem:[%s0 + $0x54] sm:$0xf]
    %v37 = vld [vmem:[%s0 + $0x58] sm:$0xf]
    %v38 = vld [vmem:[%s0 + $0x5c] sm:$0xf]
    %v39 = vld [vmem:[%s0 + $0x60] sm:$0xf]
    %v40 = vld [vmem:[%s0 + $0x64] sm:$0xf]
    %v41 = vld [vmem:[%s0 + $0x68] sm:$0xf]
    %v42 = vld [vmem:[%s0 + $0x6c] sm:$0xf]
    %v43 = vld [vmem:[%s0 + $0x70] sm:$0xf]
    %v44 = vld [vmem:[%s0 + $0x74] sm:$0xf]
    %v45 = vld [vmem:[%s0 + $0x78] sm:$0xf]
    %v46 = vld [vmem:[%s0 + $0x7c] sm:$0xf]
    %v47 = vld [vmem:[%s1] sm:$0xf]
    %v48 = vld [vmem:[%s1 + $0x4] sm:$0xf]
    %v49 = vld [vmem:[%s1 + $0x8] sm:$0xf]
    %v50 = vld [vmem:[%s1 + $0xc] sm:$0xf]
    %v51 = vld [vmem:[%s1 + $0x10] sm:$0xf]
    %v52 = vld [vmem:[%s1 + $0x14] sm:$0xf]
    %v53 = vld [vmem:[%s1 + $0x18] sm:$0xf]
    %v54 = vld [vmem:[%s1 + $0x1c] sm:$0xf]
    %v55 = vld [vmem:[%s1 + $0x20] sm:$0xf]
    %v56 = vld [vmem:[%s1 + $0x24] sm:$0xf]
    %v57 = vld [vmem:[%s1 + $0x28] sm:$0xf]
    %v58 = vld [vmem:[%s1 + $0x2c] sm:$0xf]
    %v59 = vld [vmem:[%s1 + $0x30] sm:$0xf]
    %v60 = vld [vmem:[%s1 + $0x34] sm:$0xf]
    %v61 = vld [vmem:[%s1 + $0x38] sm:$0xf]
    %v62 = vld [vmem:[%s1 + $0x3c] sm:$0xf]
    %v63 = vld [vmem:[%s2] sm:$0x1]
    %v65 = vperm.slane %v63, 0
    %v99 = vunpack.c.l.b16 %v15
    %v100 = vunpack.c.l.b16 %v16
    %v101 = vunpack.c.l.b16 %v17
    %v102 = vunpack.c.l.b16 %v18
    %v103 = vunpack.c.l.b16 %v19
    %v104 = vunpack.c.l.b16 %v20
    %v105 = vunpack.c.l.b16 %v21
    %v106 = vunpack.c.l.b16 %v22
    %v107 = vunpack.c.l.b16 %v23
    %v108 = vunpack.c.l.b16 %v24
    %v109 = vunpack.c.l.b16 %v25
    %v110 = vunpack.c.l.b16 %v26
    %v111 = vunpack.c.l.b16 %v27
    %v112 = vunpack.c.l.b16 %v28
    %v113 = vunpack.c.l.b16 %v29
    %v114 = vunpack.c.l.b16 %v30
    %v115 = vunpack.c.l.b16 %v31
    %v116 = vunpack.c.l.b16 %v32
    %v117 = vunpack.c.l.b16 %v33
    %v118 = vunpack.c.l.b16 %v34
    %v119 = vunpack.c.l.b16 %v35
    %v120 = vunpack.c.l.b16 %v36
    %v121 = vunpack.c.l.b16 %v37
    %v122 = vunpack.c.l.b16 %v38
    %v123 = vunpack.c.l.b16 %v39
    %v124 = vunpack.c.l.b16 %v40
    %v125 = vunpack.c.l.b16 %v41
    %v126 = vunpack.c.l.b16 %v42
    %v127 = vunpack.c.l.b16 %v43
    %v128 = vunpack.c.l.b16 %v44
    %v129 = vunpack.c.l.b16 %v45
    %v130 = vunpack.c.l.b16 %v46
    %v131 = vpack.c.b16 %v100, %v99
    %v132 = vpack.c.b16 %v102, %v101
    %v133 = vpack.c.b16 %v104, %v103
    %v134 = vpack.c.b16 %v106, %v105
    %v135 = vpack.c.b16 %v108, %v107
    %v136 = vpack.c.b16 %v110, %v109
    %v137 = vpack.c.b16 %v112, %v111
    %v138 = vpack.c.b16 %v114, %v113
    %v139 = vpack.c.b16 %v116, %v115
    %v140 = vpack.c.b16 %v118, %v117
    %v141 = vpack.c.b16 %v120, %v119
    %v142 = vpack.c.b16 %v122, %v121
    %v143 = vpack.c.b16 %v124, %v123
    %v144 = vpack.c.b16 %v126, %v125
    %v145 = vpack.c.b16 %v128, %v127
    %v146 = vpack.c.b16 %v130, %v129
    %v179 = vunpack.c.l.b16 %v47
    %v180 = vunpack.c.l.b16 %v48
    %v181 = vunpack.c.l.b16 %v49
    %v182 = vunpack.c.l.b16 %v50
    %v183 = vunpack.c.l.b16 %v51
    %v184 = vunpack.c.l.b16 %v52
    %v185 = vunpack.c.l.b16 %v53
    %v186 = vunpack.c.l.b16 %v54
    %v187 = vunpack.c.l.b16 %v55
    %v188 = vunpack.c.l.b16 %v56
    %v189 = vunpack.c.l.b16 %v57
    %v190 = vunpack.c.l.b16 %v58
    %v191 = vunpack.c.l.b16 %v59
    %v192 = vunpack.c.l.b16 %v60
    %v193 = vunpack.c.l.b16 %v61
    %v194 = vunpack.c.l.b16 %v62
    %v195 = vpack.c.b16 %v180, %v179
    %v196 = vpack.c.b16 %v182, %v181
    %v197 = vpack.c.b16 %v184, %v183
    %v198 = vpack.c.b16 %v186, %v185
    %v199 = vpack.c.b16 %v188, %v187
    %v200 = vpack.c.b16 %v190, %v189
    %v201 = vpack.c.b16 %v192, %v191
    %v202 = vpack.c.b16 %v194, %v193
    %211 = vmatpush.bf16.xpose.msra.mxu0 %v202
    %212 = vmatpush.bf16.xpose.msra.mxu0 %v201
    %213 = vmatpush.bf16.xpose.msra.mxu0 %v200
    %214 = vmatpush.bf16.xpose.msra.mxu0 %v199
    %215 = vmatpush.bf16.xpose.msra.mxu0 %v198
    %216 = vmatpush.bf16.xpose.msra.mxu0 %v197
    %217 = vmatpush.bf16.xpose.msra.mxu0 %v196
    %218 = vmatpush.bf16.xpose.msra.mxu0 %v195
    %219 = vmatmul.bf16.gmra.mxu0 %v131
    %v220 = vpop.f32.mrf.mxu0
    %v221 = vadd.f32 %v65, %v220
    %v222 = vpop.f32.mrf.mxu0
    %v223 = vadd.f32 %v65, %v222
    %224 = vmatmul.bf16.gmra.mxu0 %v132
    %v225 = vpop.f32.mrf.mxu0
    %v226 = vadd.f32 %v65, %v225
    %v227 = vpop.f32.mrf.mxu0
    %v228 = vadd.f32 %v65, %v227
    %229 = vmatmul.bf16.gmra.mxu0 %v133
    %v230 = vpop.f32.mrf.mxu0
    %v231 = vadd.f32 %v65, %v230
    %v232 = vpop.f32.mrf.mxu0
    %v233 = vadd.f32 %v65, %v232
    %234 = vmatmul.bf16.gmra.mxu0 %v134
    %v235 = vpop.f32.mrf.mxu0
    %v236 = vadd.f32 %v65, %v235
    %v237 = vpop.f32.mrf.mxu0
    %v238 = vadd.f32 %v65, %v237
    %239 = vmatmul.bf16.gmra.mxu0 %v135
    %v240 = vpop.f32.mrf.mxu0
    %v241 = vadd.f32 %v65, %v240
    %v242 = vpop.f32.mrf.mxu0
    %v243 = vadd.f32 %v65, %v242
    %244 = vmatmul.bf16.gmra.mxu0 %v136
    %v245 = vpop.f32.mrf.mxu0
    %v246 = vadd.f32 %v65, %v245
    %v247 = vpop.f32.mrf.mxu0
    %v248 = vadd.f32 %v65, %v247
    %249 = vmatmul.bf16.gmra.mxu0 %v137
    %v250 = vpop.f32.mrf.mxu0
    %v251 = vadd.f32 %v65, %v250
    %v252 = vpop.f32.mrf.mxu0
    %v253 = vadd.f32 %v65, %v252
    %254 = vmatmul.bf16.gmra.mxu0 %v138
    %v255 = vpop.f32.mrf.mxu0
    %v256 = vadd.f32 %v65, %v255
    %v257 = vpop.f32.mrf.mxu0
    %v258 = vadd.f32 %v65, %v257
    %259 = vmatmul.bf16.gmra.mxu0 %v139
    %v260 = vpop.f32.mrf.mxu0
    %v261 = vadd.f32 %v65, %v260
    %v262 = vpop.f32.mrf.mxu0
    %v263 = vadd.f32 %v65, %v262
    %264 = vmatmul.bf16.gmra.mxu0 %v140
    %v265 = vpop.f32.mrf.mxu0
    %v266 = vadd.f32 %v65, %v265
    %v267 = vpop.f32.mrf.mxu0
    %v268 = vadd.f32 %v65, %v267
    %269 = vmatmul.bf16.gmra.mxu0 %v141
    %v270 = vpop.f32.mrf.mxu0
    %v271 = vadd.f32 %v65, %v270
    %v272 = vpop.f32.mrf.mxu0
    %v273 = vadd.f32 %v65, %v272
    %274 = vmatmul.bf16.gmra.mxu0 %v142
    %v275 = vpop.f32.mrf.mxu0
    %v276 = vadd.f32 %v65, %v275
    %v277 = vpop.f32.mrf.mxu0
    %v278 = vadd.f32 %v65, %v277
    %279 = vmatmul.bf16.gmra.mxu0 %v143
    %v280 = vpop.f32.mrf.mxu0
    %v281 = vadd.f32 %v65, %v280
    %v282 = vpop.f32.mrf.mxu0
    %v283 = vadd.f32 %v65, %v282
    %284 = vmatmul.bf16.gmra.mxu0 %v144
    %v285 = vpop.f32.mrf.mxu0
    %v286 = vadd.f32 %v65, %v285
    %v287 = vpop.f32.mrf.mxu0
    %v288 = vadd.f32 %v65, %v287
    %289 = vmatmul.bf16.gmra.mxu0 %v145
    %v290 = vpop.f32.mrf.mxu0
    %v291 = vadd.f32 %v65, %v290
    %v292 = vpop.f32.mrf.mxu0
    %v293 = vadd.f32 %v65, %v292
    %294 = vmatmul.bf16.gmra.mxu0 %v146
    %v295 = vpop.f32.mrf.mxu0
    %v296 = vadd.f32 %v65, %v295
    %v297 = vpop.f32.mrf.mxu0
    %v298 = vadd.f32 %v65, %v297
    %299 = vdwg.mxu0
    %v300 = vmax.f32 %v221, 0.0
    %v301 = vmax.f32 %v223, 0.0
    %v302 = vmax.f32 %v226, 0.0
    %v303 = vmax.f32 %v228, 0.0
    %v304 = vmax.f32 %v231, 0.0
    %v305 = vmax.f32 %v233, 0.0
    %v306 = vmax.f32 %v236, 0.0
    %v307 = vmax.f32 %v238, 0.0
    %v308 = vmax.f32 %v241, 0.0
    %v309 = vmax.f32 %v243, 0.0
    %v310 = vmax.f32 %v246, 0.0
    %v311 = vmax.f32 %v248, 0.0
    %v312 = vmax.f32 %v251, 0.0
    %v313 = vmax.f32 %v253, 0.0
    %v314 = vmax.f32 %v256, 0.0
    %v315 = vmax.f32 %v258, 0.0
    %v316 = vmax.f32 %v261, 0.0
    %v317 = vmax.f32 %v263, 0.0
    %v318 = vmax.f32 %v266, 0.0
    %v319 = vmax.f32 %v268, 0.0
    %v320 = vmax.f32 %v271, 0.0
    %v321 = vmax.f32 %v273, 0.0
    %v322 = vmax.f32 %v276, 0.0
    %v323 = vmax.f32 %v278, 0.0
    %v324 = vmax.f32 %v281, 0.0
    %v325 = vmax.f32 %v283, 0.0
    %v326 = vmax.f32 %v286, 0.0
    %v327 = vmax.f32 %v288, 0.0
    %v328 = vmax.f32 %v291, 0.0
    %v329 = vmax.f32 %v293, 0.0
    %v330 = vmax.f32 %v296, 0.0
    %v331 = vmax.f32 %v298, 0.0
    %v332 = vpack.c.bf16 %v301, %v300
    %v333 = vpack.c.bf16 %v303, %v302
    %v334 = vpack.c.bf16 %v305, %v304
    %v335 = vpack.c.bf16 %v307, %v306
    %v336 = vpack.c.bf16 %v309, %v308
    %v337 = vpack.c.bf16 %v311, %v310
    %v338 = vpack.c.bf16 %v313, %v312
    %v339 = vpack.c.bf16 %v315, %v314
    %v340 = vpack.c.bf16 %v317, %v316
    %v341 = vpack.c.bf16 %v319, %v318
    %v342 = vpack.c.bf16 %v321, %v320
    %v343 = vpack.c.bf16 %v323, %v322
    %v344 = vpack.c.bf16 %v325, %v324
    %v345 = vpack.c.bf16 %v327, %v326
    %v346 = vpack.c.bf16 %v329, %v328
    %v347 = vpack.c.bf16 %v331, %v330
    %348 = vmatpush.bf16.xpose.msra.mxu0 %v202
    %349 = vmatpush.bf16.xpose.msra.mxu0 %v201
    %350 = vmatpush.bf16.xpose.msra.mxu0 %v200
    %351 = vmatpush.bf16.xpose.msra.mxu0 %v199
    %352 = vmatpush.bf16.xpose.msra.mxu0 %v198
    %353 = vmatpush.bf16.xpose.msra.mxu0 %v197
    %354 = vmatpush.bf16.xpose.msra.mxu0 %v196
    %355 = vmatpush.bf16.xpose.msra.mxu0 %v195
    %356 = vmatmul.bf16.gmra.mxu0 %v332
    %v357 = vpop.f32.mrf.mxu0
    %v358 = vadd.f32 %v65, %v357
    %v359 = vpop.f32.mrf.mxu0
    %v360 = vadd.f32 %v65, %v359
    %361 = vmatmul.bf16.gmra.mxu0 %v333
    %v362 = vpop.f32.mrf.mxu0
    %v363 = vadd.f32 %v65, %v362
    %v364 = vpop.f32.mrf.mxu0
    %v365 = vadd.f32 %v65, %v364
    %366 = vmatmul.bf16.gmra.mxu0 %v334
    %v367 = vpop.f32.mrf.mxu0
    %v368 = vadd.f32 %v65, %v367
    %v369 = vpop.f32.mrf.mxu0
    %v370 = vadd.f32 %v65, %v369
    %371 = vmatmul.bf16.gmra.mxu0 %v335
    %v372 = vpop.f32.mrf.mxu0
    %v373 = vadd.f32 %v65, %v372
    %v374 = vpop.f32.mrf.mxu0
    %v375 = vadd.f32 %v65, %v374
    %376 = vmatmul.bf16.gmra.mxu0 %v336
    %v377 = vpop.f32.mrf.mxu0
    %v378 = vadd.f32 %v65, %v377
    %v379 = vpop.f32.mrf.mxu0
    %v380 = vadd.f32 %v65, %v379
    %381 = vmatmul.bf16.gmra.mxu0 %v337
    %v382 = vpop.f32.mrf.mxu0
    %v383 = vadd.f32 %v65, %v382
    %v384 = vpop.f32.mrf.mxu0
    %v385 = vadd.f32 %v65, %v384
    %386 = vmatmul.bf16.gmra.mxu0 %v338
    %v387 = vpop.f32.mrf.mxu0
    %v388 = vadd.f32 %v65, %v387
    %v389 = vpop.f32.mrf.mxu0
    %v390 = vadd.f32 %v65, %v389
    %391 = vmatmul.bf16.gmra.mxu0 %v339
    %v392 = vpop.f32.mrf.mxu0
    %v393 = vadd.f32 %v65, %v392
    %v394 = vpop.f32.mrf.mxu0
    %v395 = vadd.f32 %v65, %v394
    %396 = vmatmul.bf16.gmra.mxu0 %v340
    %v397 = vpop.f32.mrf.mxu0
    %v398 = vadd.f32 %v65, %v397
    %v399 = vpop.f32.mrf.mxu0
    %v400 = vadd.f32 %v65, %v399
    %401 = vmatmul.bf16.gmra.mxu0 %v341
    %v402 = vpop.f32.mrf.mxu0
    %v403 = vadd.f32 %v65, %v402
    %v404 = vpop.f32.mrf.mxu0
    %v405 = vadd.f32 %v65, %v404
    %406 = vmatmul.bf16.gmra.mxu0 %v342
    %v407 = vpop.f32.mrf.mxu0
    %v408 = vadd.f32 %v65, %v407
    %v409 = vpop.f32.mrf.mxu0
    %v410 = vadd.f32 %v65, %v409
    %411 = vmatmul.bf16.gmra.mxu0 %v343
    %v412 = vpop.f32.mrf.mxu0
    %v413 = vadd.f32 %v65, %v412
    %v414 = vpop.f32.mrf.mxu0
    %v415 = vadd.f32 %v65, %v414
    %416 = vmatmul.bf16.gmra.mxu0 %v344
    %v417 = vpop.f32.mrf.mxu0
    %v418 = vadd.f32 %v65, %v417
    %v419 = vpop.f32.mrf.mxu0
    %v420 = vadd.f32 %v65, %v419
    %421 = vmatmul.bf16.gmra.mxu0 %v345
    %v422 = vpop.f32.mrf.mxu0
    %v423 = vadd.f32 %v65, %v422
    %v424 = vpop.f32.mrf.mxu0
    %v425 = vadd.f32 %v65, %v424
    %426 = vmatmul.bf16.gmra.mxu0 %v346
    %v427 = vpop.f32.mrf.mxu0
    %v428 = vadd.f32 %v65, %v427
    %v429 = vpop.f32.mrf.mxu0
    %v430 = vadd.f32 %v65, %v429
    %431 = vmatmul.bf16.gmra.mxu0 %v347
    %v432 = vpop.f32.mrf.mxu0
    %v433 = vadd.f32 %v65, %v432
    %v434 = vpop.f32.mrf.mxu0
    %v435 = vadd.f32 %v65, %v434
    %436 = vdwg.mxu0
    %437 = vst [vmem:[#allocation2] sm:$0xff] %v358
    %438 = vst [vmem:[#allocation2 + $0x8] sm:$0xff] %v360
    %439 = vst [vmem:[#allocation2 + $0x10] sm:$0xff] %v363
    %440 = vst [vmem:[#allocation2 + $0x18] sm:$0xff] %v365
    %441 = vst [vmem:[#allocation2 + $0x20] sm:$0xff] %v368
    %442 = vst [vmem:[#allocation2 + $0x28] sm:$0xff] %v370
    %443 = vst [vmem:[#allocation2 + $0x30] sm:$0xff] %v373
    %444 = vst [vmem:[#allocation2 + $0x38] sm:$0xff] %v375
    %445 = vst [vmem:[#allocation2 + $0x40] sm:$0xff] %v378
    %446 = vst [vmem:[#allocation2 + $0x48] sm:$0xff] %v380
    %447 = vst [vmem:[#allocation2 + $0x50] sm:$0xff] %v383
    %448 = vst [vmem:[#allocation2 + $0x58] sm:$0xff] %v385
    %449 = vst [vmem:[#allocation2 + $0x60] sm:$0xff] %v388
    %450 = vst [vmem:[#allocation2 + $0x68] sm:$0xff] %v390
    %451 = vst [vmem:[#allocation2 + $0x70] sm:$0xff] %v393
    %452 = vst [vmem:[#allocation2 + $0x78] sm:$0xff] %v395
    %453 = vst [vmem:[#allocation2 + $0x80] sm:$0xff] %v398
    %454 = vst [vmem:[#allocation2 + $0x88] sm:$0xff] %v400
    %455 = vst [vmem:[#allocation2 + $0x90] sm:$0xff] %v403
    %456 = vst [vmem:[#allocation2 + $0x98] sm:$0xff] %v405
    %457 = vst [vmem:[#allocation2 + $0xa0] sm:$0xff] %v408
    %458 = vst [vmem:[#allocation2 + $0xa8] sm:$0xff] %v410
    %459 = vst [vmem:[#allocation2 + $0xb0] sm:$0xff] %v413
    %460 = vst [vmem:[#allocation2 + $0xb8] sm:$0xff] %v415
    %461 = vst [vmem:[#allocation2 + $0xc0] sm:$0xff] %v418
    %462 = vst [vmem:[#allocation2 + $0xc8] sm:$0xff] %v420
    %463 = vst [vmem:[#allocation2 + $0xd0] sm:$0xff] %v423
    %464 = vst [vmem:[#allocation2 + $0xd8] sm:$0xff] %v425
    %465 = vst [vmem:[#allocation2 + $0xe0] sm:$0xff] %v428
    %466 = vst [vmem:[#allocation2 + $0xe8] sm:$0xff] %v430
    %467 = vst [vmem:[#allocation2 + $0xf0] sm:$0xff] %v433
    %468 = vst [vmem:[#allocation2 + $0xf8] sm:$0xff] %v435
    // Predicated region
    $region14: #{neuralnet2_forward.1} parent=1 // pred_check
      _
    $region15: #{neuralnet2_forward.1} parent=1 // pred_check_branch
      %470 = sbr.rel (0) target = $region17
    $region16: #{neuralnet2_forward.1} parent=1 // pred_region
      %472 = vsyncadd [#allocation3], 0
      %s473 = sshll.u32 [#allocation2], 4
      %s474 = int_to_ptr.vmem [resolvable:$true] %s473
      %s475 = sshll.u32 %s3, 4
      %s476 = int_to_ptr.hbm [resolvable:$true] %s475
      %481 = dma.vmem_to_hbm [thread:$0]  %s474, 4096, %s476, [#allocation3], 128, 128, 8
    $region17: #{neuralnet2_forward.1} parent=1 // pred_fallthru
      _
    // Predicated region
    $region18: #{neuralnet2_forward.1} parent=1 // pred_check
      _
    $region19: #{neuralnet2_forward.1} parent=1 // pred_check_branch
      %483 = sbr.rel (0) target = $region21
    $region20: #{neuralnet2_forward.1} parent=1 // pred_region
      %485 = dma.done [#allocation3], 4096
    $region21: #{neuralnet2_forward.1} parent=1 // pred_fallthru
      _
    %486 = vsyncpa [#allocation3], 1

</llo_original>
